<compile_context>
chip_gen: v7x
topology: tpu7x:2x2x1
jax: 0.10.0
libtpu: 0.0.40
codegen_flags: <defaults>
</compile_context>

<pallas_src>
import functools

import numpy as np
import jax
import jax.numpy as jnp
from jax.experimental import pallas as pl
from jax.experimental.pallas import tpu as pltpu


# ---------------------------------------------------------------------------
# Host-side constant construction (mirrors the PyTorch module exactly)
# ---------------------------------------------------------------------------
def xpos_multipliers(head_dim, length, offset=0, downscale=False, scale_base=512):
    """Returns (cos_mult, sin_mult), each (length, head_dim), such that
    xpos(x) == x * cos_mult + rotate_every_two(x) * sin_mult."""
    base_scale = (np.arange(0, head_dim, 2, dtype=np.float64) + 0.4 * head_dim) / (1.4 * head_dim)
    min_pos = 0
    max_pos = length + offset + min_pos
    pos = np.arange(min_pos, max_pos, dtype=np.float64)
    scale = base_scale[None, :] ** (pos / scale_base)[:, None]          # (L, head_dim/2)

    # fixed_pos_embedding(scale)
    seq_len, dim = scale.shape
    inv_freq = 1.0 / (10000.0 ** (np.arange(0, dim, dtype=np.float64) / dim))
    sinusoid = np.outer(np.arange(seq_len, dtype=np.float64), inv_freq)  # (L, dim)
    sin, cos = np.sin(sinusoid), np.cos(sinusoid)

    if scale.shape[0] > length:
        scale = scale[-length:]
        sin = sin[-length:]
        cos = cos[-length:]
    if downscale:
        scale = 1.0 / scale

    # duplicate_interleave(t * scale): repeat each column twice, interleaved
    sin_mult = np.repeat(sin * scale, 2, axis=1)                         # (L, head_dim)
    cos_mult = np.repeat(cos * scale, 2, axis=1)
    return cos_mult.astype(np.float32), sin_mult.astype(np.float32)


def rotation_matrix(head_dim):
    """R such that x @ R == rotate_every_two(x):
       out[2i] = -x[2i+1], out[2i+1] = x[2i]."""
    R = np.zeros((head_dim, head_dim), dtype=np.float32)
    R[np.arange(1, head_dim, 2), np.arange(0, head_dim, 2)] = -1.0
    R[np.arange(0, head_dim, 2), np.arange(1, head_dim, 2)] = 1.0
    return R


def get_D_parallel(gamma, num_joints, seq_len, chunk_size):
    """Mirror of JointRetention._get_D(parallel=True)."""
    D = np.zeros((num_joints, seq_len, seq_len), dtype=np.float32)
    for i in range(seq_len):
        j_range = min(seq_len, (i // chunk_size + 1) * chunk_size)
        j = np.arange(j_range)
        D[:, i, :j_range] = gamma ** np.abs(i - j)
    D[np.isnan(D)] = 0.0
    return D


# ---------------------------------------------------------------------------
# Pallas kernel: row_tile batch rows (= several joints x samples) per grid step
# ---------------------------------------------------------------------------
def joint_retention_kernel(x_ref, w_ref, xpos_ref, d_ref, o_ref,
                           *, num_joints, head_dim, v_dim):
    TB, S, H = x_ref.shape
    Dh, Dv = head_dim, v_dim
    groups = TB // num_joints

    # One fused projection matmul (bf16 in, f32 accumulate) for all rows in the
    # tile: X @ [W_Q | W_Q@R | W_K | W_K@R | W_V].
    x2 = x_ref[...].reshape(TB * S, H)                               # bf16
    proj = jnp.dot(x2, w_ref[...],
                   preferred_element_type=jnp.float32)               # (TB*S, 4Dh+Dv) f32

    q  = proj[:, 0 * Dh:1 * Dh].reshape(TB, S, Dh)
    qr = proj[:, 1 * Dh:2 * Dh].reshape(TB, S, Dh)                   # rotate_every_two(Q)
    k  = proj[:, 2 * Dh:3 * Dh].reshape(TB, S, Dh)
    kr = proj[:, 3 * Dh:4 * Dh].reshape(TB, S, Dh)                   # rotate_every_two(K)
    v  = proj[:, 4 * Dh:4 * Dh + Dv].reshape(TB, S, Dv)

    # XPOS rotary (f32 elementwise; rotation already folded into the weights).
    # xpos_ref layout: [0]=cos_q, [1]=sin_q, [2]=cos_k, [3]=sin_k, each (S, Dh).
    cq = xpos_ref[0][None]
    sq = xpos_ref[1][None]
    ck = xpos_ref[2][None]
    sk = xpos_ref[3][None]
    q = q * cq + qr * sq
    k = k * ck + kr * sk

    # Retention matrix: batched Q K^T contracting the last dims (no explicit
    # transpose of K), bf16 operands with f32 accumulation.
    ret = jnp.einsum('bqd,bkd->bqk',
                     q.astype(jnp.bfloat16), k.astype(jnp.bfloat16),
                     preferred_element_type=jnp.float32)              # (TB, S, S)

    # Per-joint decay mask (f32). Tiles start at multiples of num_joints, so
    # joints cycle within the tile and we broadcast D over the group dim.
    ret = (ret.reshape(groups, num_joints, S, S) * d_ref[...][None]
           ).reshape(TB, S, S)

    out = jnp.einsum('bqk,bkd->bqd',
                     ret.astype(jnp.bfloat16), v.astype(jnp.bfloat16),
                     preferred_element_type=jnp.float32)              # (TB, S, Dv)
    o_ref[...] = out.astype(o_ref.dtype)


def joint_retention_forward(X, W_Q, W_K, W_V, cos_q, sin_q, cos_k, sin_k, R, D,
                            num_joints, row_tile=None):
    B, S, H = X.shape
    Dh = W_Q.shape[1]
    Dv = W_V.shape[1]
    assert B % num_joints == 0

    # Fold the rotation matrix into the projection weights and fuse all five
    # projections into one wide matmul operand; cast matmul inputs to bf16.
    W_all = jnp.concatenate([W_Q, W_Q @ R, W_K, W_K @ R, W_V], axis=1)
    W_all = W_all.astype(jnp.bfloat16)
    Xb = X.astype(jnp.bfloat16)

    # Stack the XPOS multipliers into a single constant operand (4, S, Dh).
    xpos_all = jnp.stack([cos_q, sin_q, cos_k, sin_k], axis=0).astype(jnp.float32)

    groups = B // num_joints
    if row_tile is None:
        # Target ~>=256 rows per fused matmul for MXU utilization, but keep at
        # least 2 grid steps (when possible) for v7x megacore sharding.
        gps = max(1, 256 // (num_joints * S))
        if groups >= 2:
            gps = min(gps, groups // 2)
        gps = max(1, gps)
        while groups % gps:
            gps -= 1
        row_tile = gps * num_joints
    assert row_tile % num_joints == 0 and B % row_tile == 0
    TB = row_tile

    kernel = functools.partial(joint_retention_kernel,
                               num_joints=num_joints, head_dim=Dh, v_dim=Dv)

    grid_spec = pltpu.PrefetchScalarGridSpec(
        num_scalar_prefetch=0,
        grid=(B // TB,),
        in_specs=[
            pl.BlockSpec((TB, S, H), lambda b: (b, 0, 0)),            # X (bf16)
            pl.BlockSpec((H, 4 * Dh + Dv), lambda b: (0, 0)),         # fused weights (bf16)
            pl.BlockSpec((4, S, Dh), lambda b: (0, 0, 0)),            # xpos tables (f32, DMA'd once)
            pl.BlockSpec((num_joints, S, S), lambda b: (0, 0, 0)),    # D (f32, DMA'd once)
        ],
        out_specs=pl.BlockSpec((TB, S, Dv), lambda b: (b, 0, 0)),
    )

    return pl.pallas_call(
        kernel,
        out_shape=jax.ShapeDtypeStruct((B, S, Dv), jnp.float32),
        grid_spec=grid_spec,
        compiler_params=pltpu.CompilerParams(
            dimension_semantics=("parallel",)),
    )(Xb, W_all, xpos_all, D)


# ---------------------------------------------------------------------------
# Pure-JAX f32 reference (mirrors the torch forward) for verification
# ---------------------------------------------------------------------------
def reference_forward(X, W_Q, W_K, W_V, cos_q, sin_q, cos_k, sin_k, R, D, num_joints):
    B, S, H = X.shape
    Q = X @ W_Q
    K = X @ W_K
    V = X @ W_V
    Q = Q * cos_q + (Q @ R) * sin_q
    K = K * cos_k + (K @ R) * sin_k
    ret = jnp.einsum('bsh,bth->bst', Q, K)
    ret = ret.reshape(-1, num_joints, S, S) * D[None]
    ret = ret.reshape(-1, S, S)
    return ret @ V


if __name__ == "__main__":
    # Module hyper-parameters (small, consistent with the torch constructor).
    # TODO(synk): only the parallel forward() is implemented here;
    # forward_recurrent / forward_chunkwise are stateful decode paths.
    hidden_size = 32
    head_size = hidden_size          # default: head_size = hidden_size
    double_v_dim = False
    v_dim = head_size * 2 if double_v_dim else head_size
    gamma = 0.9
    seq_len = 16
    chunk_size = 4
    num_joints = 4
    n_batches = 2
    B = n_batches * num_joints       # leading dim of X (batch * joints)

    # Deterministic parameter init (W ~ randn / hidden_size, as in __init__)
    key = jax.random.PRNGKey(0)
    kx, kq, kk, kv = jax.random.split(key, 4)
    W_Q = (jax.random.normal(kq, (hidden_size, head_size), jnp.float32) / hidden_size)
    W_K = (jax.random.normal(kk, (hidden_size, head_size), jnp.float32) / hidden_size)
    W_V = (jax.random.normal(kv, (hidden_size, v_dim), jnp.float32) / hidden_size)

    # Input X: (B, S, H)
    X = jax.random.normal(kx, (B, seq_len, hidden_size), jnp.float32)

    # XPOS constants (Q: downscale=False, K: downscale=True), rotation matrix, decay mask
    cos_q, sin_q = xpos_multipliers(head_size, seq_len, offset=0, downscale=False)
    cos_k, sin_k = xpos_multipliers(head_size, seq_len, offset=0, downscale=True)
    R = rotation_matrix(head_size)
    D = get_D_parallel(gamma, num_joints, seq_len, chunk_size)

    cos_q = jnp.asarray(cos_q); sin_q = jnp.asarray(sin_q)
    cos_k = jnp.asarray(cos_k); sin_k = jnp.asarray(sin_k)
    R = jnp.asarray(R); D = jnp.asarray(D)

    out = joint_retention_forward(X, W_Q, W_K, W_V,
                                  cos_q, sin_q, cos_k, sin_k, R, D, num_joints)
    out = jax.block_until_ready(out)

    ref = reference_forward(X, W_Q, W_K, W_V,
                            cos_q, sin_q, cos_k, sin_k, R, D, num_joints)
    ref = jax.block_until_ready(ref)

    assert out.shape == (B, seq_len, v_dim), out.shape
    # Kernel matmuls run in bf16 (f32 accumulation); reference is pure f32,
    # so use a bf16-appropriate tolerance.
    np.testing.assert_allclose(np.asarray(out), np.asarray(ref), rtol=2e-2, atol=2e-2)

    print("KERNEL_OK")
</pallas_src>

<mosaic_0001>
module attributes {stable_mosaic.version = 11 : i64} {
  func.func @joint_retention_kernel(%arg0: i32, %arg1: memref<4x16x32xbf16, #tpu.memory_space<vmem>>, %arg2: memref<32x160xbf16, #tpu.memory_space<vmem>>, %arg3: memref<4x16x32xf32, #tpu.memory_space<vmem>>, %arg4: memref<4x16x16xf32, #tpu.memory_space<vmem>>, %arg5: memref<4x16x32xf32, #tpu.memory_space<vmem>>) attributes {dimension_semantics = [#tpu.dimension_semantics<parallel>], iteration_bounds = array<i64: 2>, scalar_prefetch = 0 : i64, scratch_operands = 0 : i64, tpu.core_type = #tpu.core_type<tc>, window_params = [{transform_indices = @transform_0, window_bounds = array<i64: 4, 16, 32>}, {pipeline_mode = #tpu.pipeline_mode<synchronous>, transform_indices = @transform_1, window_bounds = array<i64: 32, 160>}, {pipeline_mode = #tpu.pipeline_mode<synchronous>, transform_indices = @transform_2, window_bounds = array<i64: 4, 16, 32>}, {pipeline_mode = #tpu.pipeline_mode<synchronous>, transform_indices = @transform_3, window_bounds = array<i64: 4, 16, 16>}, {transform_indices = @transform_4, window_bounds = array<i64: 4, 16, 32>}]} {
    %c0 = arith.constant 0 : index
    %c0_0 = arith.constant 0 : index
    %c0_1 = arith.constant 0 : index
    %0 = vector.load %arg1[%c0, %c0_0, %c0_1] : memref<4x16x32xbf16, #tpu.memory_space<vmem>>, vector<4x16x32xbf16>
    %1 = vector.shape_cast %0 : vector<4x16x32xbf16> to vector<64x32xbf16>
    %c0_2 = arith.constant 0 : index
    %c0_3 = arith.constant 0 : index
    %2 = vector.load %arg2[%c0_2, %c0_3] : memref<32x160xbf16, #tpu.memory_space<vmem>>, vector<32x160xbf16>
    %cst = arith.constant dense<0.000000e+00> : vector<64x160xf32>
    %3 = tpu.matmul %1, %2, %cst {dimension_numbers = #tpu.dot_dimension_numbers<[1], [0], [0], [1], [0, 0, 1, 1], [], []>} : vector<64x32xbf16>, vector<32x160xbf16>, vector<64x160xf32> -> vector<64x160xf32>
    %4 = vector.extract_strided_slice %3 {offsets = [0, 0], sizes = [64, 32], strides = [1, 1]} : vector<64x160xf32> to vector<64x32xf32>
    %5 = vector.shape_cast %4 : vector<64x32xf32> to vector<4x16x32xf32>
    %6 = vector.extract_strided_slice %3 {offsets = [0, 32], sizes = [64, 32], strides = [1, 1]} : vector<64x160xf32> to vector<64x32xf32>
    %7 = vector.shape_cast %6 : vector<64x32xf32> to vector<4x16x32xf32>
    %8 = vector.extract_strided_slice %3 {offsets = [0, 64], sizes = [64, 32], strides = [1, 1]} : vector<64x160xf32> to vector<64x32xf32>
    %9 = vector.shape_cast %8 : vector<64x32xf32> to vector<4x16x32xf32>
    %10 = vector.extract_strided_slice %3 {offsets = [0, 96], sizes = [64, 32], strides = [1, 1]} : vector<64x160xf32> to vector<64x32xf32>
    %11 = vector.shape_cast %10 : vector<64x32xf32> to vector<4x16x32xf32>
    %12 = vector.extract_strided_slice %3 {offsets = [0, 128], sizes = [64, 32], strides = [1, 1]} : vector<64x160xf32> to vector<64x32xf32>
    %13 = vector.shape_cast %12 : vector<64x32xf32> to vector<4x16x32xf32>
    %c0_4 = arith.constant 0 : index
    %c0_5 = arith.constant 0 : index
    %c0_6 = arith.constant 0 : index
    %14 = vector.load %arg3[%c0_4, %c0_5, %c0_6] : memref<4x16x32xf32, #tpu.memory_space<vmem>>, vector<1x16x32xf32>
    %15 = vector.shape_cast %14 : vector<1x16x32xf32> to vector<16x32xf32>
    %16 = vector.shape_cast %15 : vector<16x32xf32> to vector<1x16x32xf32>
    %c1 = arith.constant 1 : index
    %c0_7 = arith.constant 0 : index
    %c0_8 = arith.constant 0 : index
    %17 = vector.load %arg3[%c1, %c0_7, %c0_8] : memref<4x16x32xf32, #tpu.memory_space<vmem>>, vector<1x16x32xf32>
    %18 = vector.shape_cast %17 : vector<1x16x32xf32> to vector<16x32xf32>
    %19 = vector.shape_cast %18 : vector<16x32xf32> to vector<1x16x32xf32>
    %c2 = arith.constant 2 : index
    %c0_9 = arith.constant 0 : index
    %c0_10 = arith.constant 0 : index
    %20 = vector.load %arg3[%c2, %c0_9, %c0_10] : memref<4x16x32xf32, #tpu.memory_space<vmem>>, vector<1x16x32xf32>
    %21 = vector.shape_cast %20 : vector<1x16x32xf32> to vector<16x32xf32>
    %22 = vector.shape_cast %21 : vector<16x32xf32> to vector<1x16x32xf32>
    %c3 = arith.constant 3 : index
    %c0_11 = arith.constant 0 : index
    %c0_12 = arith.constant 0 : index
    %23 = vector.load %arg3[%c3, %c0_11, %c0_12] : memref<4x16x32xf32, #tpu.memory_space<vmem>>, vector<1x16x32xf32>
    %24 = vector.shape_cast %23 : vector<1x16x32xf32> to vector<16x32xf32>
    %25 = vector.shape_cast %24 : vector<16x32xf32> to vector<1x16x32xf32>
    %26 = vector.broadcast %16 : vector<1x16x32xf32> to vector<4x16x32xf32>
    %27 = arith.mulf %5, %26 : vector<4x16x32xf32>
    %28 = vector.broadcast %19 : vector<1x16x32xf32> to vector<4x16x32xf32>
    %29 = arith.mulf %7, %28 : vector<4x16x32xf32>
    %30 = arith.addf %27, %29 : vector<4x16x32xf32>
    %31 = vector.broadcast %22 : vector<1x16x32xf32> to vector<4x16x32xf32>
    %32 = arith.mulf %9, %31 : vector<4x16x32xf32>
    %33 = vector.broadcast %25 : vector<1x16x32xf32> to vector<4x16x32xf32>
    %34 = arith.mulf %11, %33 : vector<4x16x32xf32>
    %35 = arith.addf %32, %34 : vector<4x16x32xf32>
    %36 = arith.truncf %30 : vector<4x16x32xf32> to vector<4x16x32xbf16>
    %37 = arith.truncf %35 : vector<4x16x32xf32> to vector<4x16x32xbf16>
    "tpu.trace_start"() <{level = 10 : i32, message = "bqd,bkd->bqk"}> : () -> ()
    %cst_13 = arith.constant dense<0.000000e+00> : vector<4x16x16xf32>
    %38 = tpu.matmul %36, %37, %cst_13 {dimension_numbers = #tpu.dot_dimension_numbers<[2], [2], [1], [1], [0, 0, 0, 1, 1, 1], [0], [0]>} : vector<4x16x32xbf16>, vector<4x16x32xbf16>, vector<4x16x16xf32> -> vector<4x16x16xf32>
    "tpu.trace_stop"() : () -> ()
    %39 = vector.shape_cast %38 : vector<4x16x16xf32> to vector<1x4x16x16xf32>
    %c0_14 = arith.constant 0 : index
    %c0_15 = arith.constant 0 : index
    %c0_16 = arith.constant 0 : index
    %40 = vector.load %arg4[%c0_14, %c0_15, %c0_16] : memref<4x16x16xf32, #tpu.memory_space<vmem>>, vector<4x16x16xf32>
    %41 = vector.shape_cast %40 : vector<4x16x16xf32> to vector<1x4x16x16xf32>
    %42 = arith.mulf %39, %41 : vector<1x4x16x16xf32>
    %43 = vector.shape_cast %42 : vector<1x4x16x16xf32> to vector<4x16x16xf32>
    %44 = arith.truncf %43 : vector<4x16x16xf32> to vector<4x16x16xbf16>
    %45 = arith.truncf %13 : vector<4x16x32xf32> to vector<4x16x32xbf16>
    "tpu.trace_start"() <{level = 10 : i32, message = "bqk,bkd->bqd"}> : () -> ()
    %cst_17 = arith.constant dense<0.000000e+00> : vector<4x16x32xf32>
    %46 = tpu.matmul %44, %45, %cst_17 {dimension_numbers = #tpu.dot_dimension_numbers<[2], [1], [1], [2], [0, 0, 0, 1, 1, 2], [0], [0]>} : vector<4x16x16xbf16>, vector<4x16x32xbf16>, vector<4x16x32xf32> -> vector<4x16x32xf32>
    "tpu.trace_stop"() : () -> ()
    %c0_18 = arith.constant 0 : index
    %c0_19 = arith.constant 0 : index
    %c0_20 = arith.constant 0 : index
    %47 = vector.load %arg5[%c0_18, %c0_19, %c0_20] : memref<4x16x32xf32, #tpu.memory_space<vmem>>, vector<4x16x32xf32>
    tpu.vector_store %arg5[%c0_18, %c0_19, %c0_20], %46 {strides = array<i32>} : memref<4x16x32xf32, #tpu.memory_space<vmem>>, vector<4x16x32xf32>,
    return
  }
  func.func @transform_0(%arg0: i32) -> (i32, i32, i32) {
    %c0_i32 = arith.constant 0 : i32
    %c0_i32_0 = arith.constant 0 : i32
    %c0_i32_1 = arith.constant 0 : i32
    return %arg0, %c0_i32, %c0_i32_0 : i32, i32, i32
  }
  func.func @transform_1(%arg0: i32) -> (i32, i32) {
    %c0_i32 = arith.constant 0 : i32
    %c0_i32_0 = arith.constant 0 : i32
    %c0_i32_1 = arith.constant 0 : i32
    return %c0_i32, %c0_i32_0 : i32, i32
  }
  func.func @transform_2(%arg0: i32) -> (i32, i32, i32) {
    %c0_i32 = arith.constant 0 : i32
    %c0_i32_0 = arith.constant 0 : i32
    %c0_i32_1 = arith.constant 0 : i32
    %c0_i32_2 = arith.constant 0 : i32
    return %c0_i32, %c0_i32_0, %c0_i32_1 : i32, i32, i32
  }
  func.func @transform_3(%arg0: i32) -> (i32, i32, i32) {
    %c0_i32 = arith.constant 0 : i32
    %c0_i32_0 = arith.constant 0 : i32
    %c0_i32_1 = arith.constant 0 : i32
    %c0_i32_2 = arith.constant 0 : i32
    return %c0_i32, %c0_i32_0, %c0_i32_1 : i32, i32, i32
  }
  func.func @transform_4(%arg0: i32) -> (i32, i32, i32) {
    %c0_i32 = arith.constant 0 : i32
    %c0_i32_0 = arith.constant 0 : i32
    %c0_i32_1 = arith.constant 0 : i32
    return %arg0, %c0_i32, %c0_i32_0 : i32, i32, i32
  }
}

</mosaic_0001>

<llo_original>
// kernel: tpu_custom_call.1
$region0: #{tpu_custom_call.1}
  #allocation0 [shape = 'u32[]', space=smem, size = 0x4, offset = 0x4, fixed_abs, tag = 'smem constant byte address 0x4 - core index']
  #allocation1 [shape = 'u32[144,128]{1,0:T(1,128)}', space=vmem, size = 0x12000, scoped, tag = 'internal scratch']
  %s0 = inlined_call_operand.hbm [shape: bf16[8,16,32], index: 0, kind: input, shape index: {}]
  %s1 = inlined_call_operand.hbm [shape: bf16[32,160], index: 1, kind: input, shape index: {}]
  %s2 = inlined_call_operand.hbm [shape: f32[4,16,32], index: 2, kind: input, shape index: {}]
  %s3 = inlined_call_operand.hbm [shape: f32[4,16,16], index: 3, kind: input, shape index: {}]
  %s4 = inlined_call_operand.hbm [shape: f32[8,16,32], index: 4, kind: output, shape index: {}]
  %s5 = sld [smem:[#allocation0]]
  $region65: #{tpu_custom_call.1} parent=0
    _
  %s7 = ssub.s32 1, %s5
  %s8 = scalar_select 0, %s7, %s5
  $region1: #{tpu_custom_call.1} parent=0
    #allocation2 [shape = 'u8[32768]{0}', space=vmem, size = 0x8000, scoped, tag = 'input window, operand 0']
    #allocation3 [shape = 's32[2]{0}', space=sflag, size = 0x8, scoped, tag = 'scoped memory for tpu_custom_call.1']
    #allocation4 [shape = 's32[2]{0}', space=sflag, size = 0x8, scoped, tag = 'scoped memory for tpu_custom_call.1']
    #allocation5 [shape = 'u8[16384]{0}', space=vmem, size = 0x4000, scoped, tag = 'input window, operand 1, single buffered']
    #allocation6 [shape = 's32[1]{0}', space=sflag, size = 0x4, scoped, tag = 'scoped memory for tpu_custom_call.1']
    #allocation7 [shape = 'u8[32768]{0}', space=vmem, size = 0x8000, scoped, tag = 'input window, operand 2, single buffered']
    #allocation8 [shape = 'u8[32768]{0}', space=vmem, size = 0x8000, scoped, tag = 'input window, operand 3, single buffered']
    #allocation9 [shape = 's32[1]{0}', space=sflag, size = 0x4, scoped, tag = 'scoped memory for tpu_custom_call.1']
    #allocation10 [shape = 'u8[65536]{0}', space=vmem, size = 0x10000, scoped, tag = 'output window, operand 0']
    %9 = vsyncpa [#allocation3], 0
    %s10 = scalar_lea.sflag [#allocation3], 1
    %11 = vsyncpa %s10, 0
    %12 = vsyncpa [#allocation6], 0
    %13 = vsyncpa [#allocation9], 0
    %14 = vsyncpa [#allocation4], 0
    %s15 = scalar_lea.sflag [#allocation4], 1
    %16 = vsyncpa %s15, 0
    loop: start=0, step=1, limit=4
    $region2: #{tpu_custom_call.1} parent=1 // loop_pre_header
      _
    $region3: #{tpu_custom_call.1} parent=1 // loop_header
      %s18 = sphi 0, %s22
      %p19 = scmp.ge.s32.totalorder %s18, 4
      %s28 = sphi 0, %s30
      %s31 = sphi 0, %s28
      %s32 = sphi 0, %s31
      %s48 = sphi 0, %s32
      %s52 = sphi 0, %s52
      %s54 = sphi 0, %s52
      %s55 = sphi 0, %s54
      %s69 = sphi 0, %s55
      %s73 = sphi 0, %s73
      %s75 = sphi 0, %s73
      %s76 = sphi 0, %s75
      %s90 = sphi 0, %s76
      %s94 = sphi 0, %s94
      %s96 = sphi 0, %s94
      %s97 = sphi 0, %s96
      %s111 = sphi 0, %s97
      %s117 = sphi 0, %s119
      %s120 = sphi 0, %s117
      %s121 = sphi 0, %s120
      %s137 = sphi 0, %s121
    $region4: #{tpu_custom_call.1} parent=1 // loop_header_branch
      %21 = sbr.rel (%p19) target = $region8
    $region5: #{tpu_custom_call.1} parent=1 // loop_body
      %s23 = ssub.s32 %s18, 1
      %s24 = ssub.s32 %s18, 2
      %s25 = sadd.s32 %s18, 1
      %s26 = ssub.s32 %s18, %s25
      %p27 = scmp.eq.s32.totalorder %s26, 0
      %s29 = sadd.s32 %s28, 1
      %s30 = scalar_select %p27, %s28, %s29
      %p33 = pneg %p27
      %p34 = scmp.eq.s32.totalorder %s18, 1
      %p35 = por %p33, %p34
      %p36 = scmp.ne.s32.totalorder %s28, %s31
      %p37 = scmp.eq.s32.totalorder %s18, 0
      %p38 = por %p36, %p37
      %p39 = scmp.ne.s32.totalorder %s28, %s31
      %p40 = scmp.eq.s32.totalorder %s23, 1
      %p41 = por %p39, %p40
      %p42 = scmp.ne.s32.totalorder %s31, %s32
      %p43 = scmp.eq.s32.totalorder %s23, 0
      %p44 = por %p42, %p43
      %p45 = scmp.ne.s32.totalorder %s31, %s32
      %p46 = scmp.eq.s32.totalorder %s24, 1
      %p47 = por %p45, %p46
      %p49 = scmp.ne.s32.totalorder %s32, %s48
      %p50 = scmp.eq.s32.totalorder %s24, 0
      %p51 = por %p49, %p50
      %s53 = sadd.s32 %s52, 1
      %p56 = scmp.eq.s32.totalorder %s18, 1
      %p57 = scmp.ne.s32.totalorder %s52, %s54
      %p58 = scmp.eq.s32.totalorder %s18, 0
      %p59 = por %p57, %p58
      %p60 = scmp.ne.s32.totalorder %s52, %s54
      %p61 = scmp.eq.s32.totalorder %s23, 1
      %p62 = por %p60, %p61
      %p63 = scmp.ne.s32.totalorder %s54, %s55
      %p64 = scmp.eq.s32.totalorder %s23, 0
      %p65 = por %p63, %p64
      %p66 = scmp.ne.s32.totalorder %s54, %s55
      %p67 = scmp.eq.s32.totalorder %s24, 1
      %p68 = por %p66, %p67
      %p70 = scmp.ne.s32.totalorder %s55, %s69
      %p71 = scmp.eq.s32.totalorder %s24, 0
      %p72 = por %p70, %p71
      %s74 = sadd.s32 %s73, 1
      %p77 = scmp.eq.s32.totalorder %s18, 1
      %p78 = scmp.ne.s32.totalorder %s73, %s75
      %p79 = scmp.eq.s32.totalorder %s18, 0
      %p80 = por %p78, %p79
      %p81 = scmp.ne.s32.totalorder %s73, %s75
      %p82 = scmp.eq.s32.totalorder %s23, 1
      %p83 = por %p81, %p82
      %p84 = scmp.ne.s32.totalorder %s75, %s76
      %p85 = scmp.eq.s32.totalorder %s23, 0
      %p86 = por %p84, %p85
      %p87 = scmp.ne.s32.totalorder %s75, %s76
      %p88 = scmp.eq.s32.totalorder %s24, 1
      %p89 = por %p87, %p88
      %p91 = scmp.ne.s32.totalorder %s76, %s90
      %p92 = scmp.eq.s32.totalorder %s24, 0
      %p93 = por %p91, %p92
      %s95 = sadd.s32 %s94, 1
      %p98 = scmp.eq.s32.totalorder %s18, 1
      %p99 = scmp.ne.s32.totalorder %s94, %s96
      %p100 = scmp.eq.s32.totalorder %s18, 0
      %p101 = por %p99, %p100
      %p102 = scmp.ne.s32.totalorder %s94, %s96
      %p103 = scmp.eq.s32.totalorder %s23, 1
      %p104 = por %p102, %p103
      %p105 = scmp.ne.s32.totalorder %s96, %s97
      %p106 = scmp.eq.s32.totalorder %s23, 0
      %p107 = por %p105, %p106
      %p108 = scmp.ne.s32.totalorder %s96, %s97
      %p109 = scmp.eq.s32.totalorder %s24, 1
      %p110 = por %p108, %p109
      %p112 = scmp.ne.s32.totalorder %s97, %s111
      %p113 = scmp.eq.s32.totalorder %s24, 0
      %p114 = por %p112, %p113
      %s115 = ssub.s32 %s18, %s25
      %p116 = scmp.eq.s32.totalorder %s115, 0
      %s118 = sadd.s32 %s117, 1
      %s119 = scalar_select %p116, %s117, %s118
      %p122 = pneg %p116
      %p123 = scmp.eq.s32.totalorder %s18, 1
      %p124 = por %p122, %p123
      %p125 = scmp.ne.s32.totalorder %s117, %s120
      %p126 = scmp.eq.s32.totalorder %s18, 0
      %p127 = por %p125, %p126
      %p128 = scmp.ne.s32.totalorder %s117, %s120
      %p129 = scmp.eq.s32.totalorder %s23, 1
      %p130 = por %p128, %p129
      %p131 = scmp.ne.s32.totalorder %s120, %s121
      %p132 = scmp.eq.s32.totalorder %s23, 0
      %p133 = por %p131, %p132
      %p134 = scmp.ne.s32.totalorder %s120, %s121
      %p135 = scmp.eq.s32.totalorder %s24, 1
      %p136 = por %p134, %p135
      %p138 = scmp.ne.s32.totalorder %s121, %s137
      %p139 = scmp.eq.s32.totalorder %s24, 0
      %p140 = por %p138, %p139
      %p141 = scmp.le.s32.totalorder 1, %s18
      %p142 = scmp.lt.s32.totalorder %s18, 3
      %p143 = pnand %p141, %p142
      %p144 = pneg %p143
      // Predicated region
      $region9: #{tpu_custom_call.1} parent=5 // pred_check
        _
      $region10: #{tpu_custom_call.1} parent=5 // pred_check_branch
        %146 = sbr.rel (%p143) target = $region12
      $region11: #{tpu_custom_call.1} parent=5 // pred_region
        %s147 = ssub.s32 %s18, 1
        // Predicated region
        $region13: #{tpu_custom_call.1} parent=11 // pred_check
          %p148 = pneg %p65
        $region14: #{tpu_custom_call.1} parent=11 // pred_check_branch
          %150 = sbr.rel (%p148) target = $region16
        $region15: #{tpu_custom_call.1} parent=11 // pred_region
          %s152 = ssub.s32 512, 512
          %153 = vsyncadd [#allocation6], %s152
          %s154 = sshll.u32 [#allocation5], 4
          %s155 = int_to_ptr.vmem [resolvable:$true] %s154
          %160 = dma.hbm_to_vmem [thread:$0]  %s1, 512, %s155, [#allocation6], 128, 128, 8
        $region16: #{tpu_custom_call.1} parent=11 // pred_fallthru
          _
        // Predicated region
        $region17: #{tpu_custom_call.1} parent=11 // pred_check
          %p161 = pneg %p86
        $region18: #{tpu_custom_call.1} parent=11 // pred_check_branch
          %163 = sbr.rel (%p161) target = $region20
        $region19: #{tpu_custom_call.1} parent=11 // pred_region
          %s165 = ssub.s32 1024, 1024
          %166 = vsyncadd [#allocation6], %s165
          %s167 = sshll.u32 [#allocation7], 4
          %s168 = int_to_ptr.vmem [resolvable:$true] %s167
          %173 = dma.hbm_to_vmem [thread:$0]  %s2, 1024, %s168, [#allocation6], 128, 128, 8
        $region20: #{tpu_custom_call.1} parent=11 // pred_fallthru
          _
        // Predicated region
        $region21: #{tpu_custom_call.1} parent=11 // pred_check
          %p174 = pneg %p107
        $region22: #{tpu_custom_call.1} parent=11 // pred_check_branch
          %176 = sbr.rel (%p174) target = $region24
        $region23: #{tpu_custom_call.1} parent=11 // pred_region
          %s178 = ssub.s32 1024, 1024
          %179 = vsyncadd [#allocation9], %s178
          %s180 = sshll.u32 [#allocation8], 4
          %s181 = int_to_ptr.vmem [resolvable:$true] %s180
          %186 = dma.hbm_to_vmem [thread:$0]  %s3, 1024, %s181, [#allocation9], 128, 128, 8
        $region24: #{tpu_custom_call.1} parent=11 // pred_fallthru
          _
      $region12: #{tpu_custom_call.1} parent=5 // pred_fallthru
        _
      %p187 = scmp.lt.s32.totalorder %s18, 2
      // Predicated region
      $region25: #{tpu_custom_call.1} parent=5 // pred_check
        %p188 = pneg %p187
      $region26: #{tpu_custom_call.1} parent=5 // pred_check_branch
        %190 = sbr.rel (%p188) target = $region28
      $region27: #{tpu_custom_call.1} parent=5 // pred_region
        // Predicated region
        $region29: #{tpu_custom_call.1} parent=27 // pred_check
          %p191 = pneg %p38
        $region30: #{tpu_custom_call.1} parent=27 // pred_check_branch
          %193 = sbr.rel (%p191) target = $region32
        $region31: #{tpu_custom_call.1} parent=27 // pred_region
          %s194 = sand.u32 %s28, 1
          %s195 = scalar_lea.sflag [#allocation3], %s194
          %s196 = sand.u32 %s28, 1
          %s197 = smul.addr %s196, 32
          %s198 = scalar_lea.vmem [#allocation2], %s197
          %s199 = smul.u32 4, %s18
          %s201 = ssub.s32 512, 512
          %202 = vsyncadd %s195, %s201
          %s203 = smul.addr %s199, 2
          %s204 = smul.addr %s203, 64
          %s205 = scalar_lea.hbm %s0, %s204
          %s206 = sshll.u32 %s198, 4
          %s207 = int_to_ptr.vmem [resolvable:$true] %s206
          %212 = dma.hbm_to_vmem [thread:$0]  %s205, 512, %s207, %s195, 64, 64, 4
        $region32: #{tpu_custom_call.1} parent=27 // pred_fallthru
          _
      $region28: #{tpu_custom_call.1} parent=5 // pred_fallthru
        _
      %p213 = scmp.le.s32.totalorder 1, %s18
      %p214 = scmp.lt.s32.totalorder %s18, 3
      %p215 = pnand %p213, %p214
      %p216 = pneg %p215
      // Predicated region
      $region33: #{tpu_custom_call.1} parent=5 // pred_check
        _
      $region34: #{tpu_custom_call.1} parent=5 // pred_check_branch
        %218 = sbr.rel (%p215) target = $region36
      $region35: #{tpu_custom_call.1} parent=5 // pred_region
        %s219 = ssub.s32 %s18, 1
        %s220 = sand.u32 %s31, 1
        %s221 = scalar_lea.sflag [#allocation3], %s220
        %s222 = sand.u32 %s31, 1
        %s223 = smul.addr %s222, 32
        %s224 = scalar_lea.vmem [#allocation2], %s223
        // Predicated region
        $region37: #{tpu_custom_call.1} parent=35 // pred_check
          %p225 = pneg %p44
        $region38: #{tpu_custom_call.1} parent=35 // pred_check_branch
          %227 = sbr.rel (%p225) target = $region40
        $region39: #{tpu_custom_call.1} parent=35 // pred_region
          %228 = dma.done %s221, 512
        $region40: #{tpu_custom_call.1} parent=35 // pred_fallthru
          _
        // Predicated region
        $region41: #{tpu_custom_call.1} parent=35 // pred_check
          %p229 = pneg %p65
        $region42: #{tpu_custom_call.1} parent=35 // pred_check_branch
          %231 = sbr.rel (%p229) target = $region44
        $region43: #{tpu_custom_call.1} parent=35 // pred_region
          %232 = dma.done [#allocation6], 512
        $region44: #{tpu_custom_call.1} parent=35 // pred_fallthru
          _
        // Predicated region
        $region45: #{tpu_custom_call.1} parent=35 // pred_check
          %p233 = pneg %p86
        $region46: #{tpu_custom_call.1} parent=35 // pred_check_branch
          %235 = sbr.rel (%p233) target = $region48
        $region47: #{tpu_custom_call.1} parent=35 // pred_region
          %236 = dma.done [#allocation6], 1024
        $region48: #{tpu_custom_call.1} parent=35 // pred_fallthru
          _
        // Predicated region
        $region49: #{tpu_custom_call.1} parent=35 // pred_check
          %p237 = pneg %p107
        $region50: #{tpu_custom_call.1} parent=35 // pred_check_branch
          %239 = sbr.rel (%p237) target = $region52
        $region51: #{tpu_custom_call.1} parent=35 // pred_region
          %240 = dma.done [#allocation9], 1024
        $region52: #{tpu_custom_call.1} parent=35 // pred_fallthru
          _
        %s241 = sand.u32 %s31, 1
        %s242 = scalar_lea.sflag [#allocation3], %s241
        %s243 = sand.u32 %s31, 1
        %s244 = smul.addr %s243, 32
        %s245 = scalar_lea.vmem [#allocation2], %s244
        %p246 = pneg %p44
        %p247 = pneg %p41
        %p248 = pneg %p65
        %p249 = pneg %p62
        %p250 = pneg %p86
        %p251 = pneg %p83
        %p252 = pneg %p107
        %p253 = pneg %p104
        %p254 = pneg %p133
        %p255 = pneg %p130
        %s256 = sand.u32 %s120, 1
        %s257 = scalar_lea.sflag [#allocation4], %s256
        %s258 = sand.u32 %s120, 1
        %s259 = smul.addr %s258, 64
        %s260 = scalar_lea.vmem [#allocation10], %s259
        %s261 = smul.u32 4, %s23
        %s262 = smul.u32 4, %s23
        %v264 = vld [vmem:[%s224] sm:$0xf]
        %v265 = vld [vmem:[%s224 + $0x4] sm:$0xf]
        %v266 = vld [vmem:[%s224 + $0x8] sm:$0xf]
        %v267 = vld [vmem:[%s224 + $0xc] sm:$0xf]
        %v268 = vld [vmem:[%s224 + $0x10] sm:$0xf]
        %v269 = vld [vmem:[%s224 + $0x14] sm:$0xf]
        %v270 = vld [vmem:[%s224 + $0x18] sm:$0xf]
        %v271 = vld [vmem:[%s224 + $0x1c] sm:$0xf]
        %v272 = vld [vmem:[#allocation5] sm:$0xff]
        %v273 = vld [vmem:[#allocation5 + $0x8] sm:$0xff]
        %v274 = vld [vmem:[#allocation5 + $0x10] sm:$0xff]
        %v275 = vld [vmem:[#allocation5 + $0x18] sm:$0xff]
        %v284 = vunpack.c.l.b16 %v264
        %v285 = vunpack.c.l.b16 %v265
        %v286 = vunpack.c.l.b16 %v266
        %v287 = vunpack.c.l.b16 %v267
        %v288 = vunpack.c.l.b16 %v268
        %v289 = vunpack.c.l.b16 %v269
        %v290 = vunpack.c.l.b16 %v270
        %v291 = vunpack.c.l.b16 %v271
        %v292 = vpack.c.b16 %v285, %v284
        %v293 = vpack.c.b16 %v287, %v286
        %v294 = vpack.c.b16 %v289, %v288
        %v295 = vpack.c.b16 %v291, %v290
        %v300 = vunpack.c.l.b16 %v272
        %v301 = vunpack.c.h.b16 %v272
        %v302 = vunpack.c.l.b16 %v273
        %v303 = vunpack.c.h.b16 %v273
        %v304 = vunpack.c.l.b16 %v274
        %v305 = vunpack.c.h.b16 %v274
        %v306 = vunpack.c.l.b16 %v275
        %v307 = vunpack.c.h.b16 %v275
        %v308 = vpack.c.b16 %v302, %v300
        %v309 = vpack.c.b16 %v303, %v301
        %v310 = vpack.c.b16 %v306, %v304
        %v311 = vpack.c.b16 %v307, %v305
        %vm316 = vcmask 261120
        %v318 = vsel %vm316, %v292, 0
        %v321 = vsel %vm316, %v293, 0
        %v324 = vsel %vm316, %v294, 0
        %v327 = vsel %vm316, %v295, 0
        %329 = vmatprep.subr.bf16.mxu0 %v309
        %330 = vmatpush1.bf16.msra.mxu0 %v308
        %331 = vmatprep.subr.bf16.mxu0 %v311
        %332 = vmatpush1.bf16.msra.mxu0 %v310
        %333 = vmatprep.subr.bf16.mxu0 0
        %334 = vmatpush1.bf16.msra.mxu0 0
        %335 = vmatprep.subr.bf16.mxu0 0
        %336 = vmatpush1.bf16.msra.mxu0 0
        %337 = vmatprep.subr.bf16.mxu0 0
        %338 = vmatpush1.bf16.msra.mxu0 0
        %339 = vmatprep.subr.bf16.mxu0 0
        %340 = vmatpush1.bf16.msra.mxu0 0
        %341 = vmatprep.subr.bf16.mxu0 0
        %342 = vmatpush1.bf16.msra.mxu0 0
        %343 = vmatprep.subr.bf16.mxu0 0
        %344 = vmatpush1.bf16.msra.mxu0 0
        %345 = vmatprep.subr.bf16.mxu0 0
        %346 = vmatpush1.bf16.msra.mxu0 0
        %347 = vmatprep.subr.bf16.mxu0 0
        %348 = vmatpush1.bf16.msra.mxu0 0
        %349 = vmatprep.subr.bf16.mxu0 0
        %350 = vmatpush1.bf16.msra.mxu0 0
        %351 = vmatprep.subr.bf16.mxu0 0
        %352 = vmatpush1.bf16.msra.mxu0 0
        %353 = vmatprep.subr.bf16.mxu0 0
        %354 = vmatpush1.bf16.msra.mxu0 0
        %355 = vmatprep.subr.bf16.mxu0 0
        %356 = vmatpush1.bf16.msra.mxu0 0
        %357 = vmatprep.subr.bf16.mxu0 0
        %358 = vmatpush1.bf16.msra.mxu0 0
        %359 = vmatprep.subr.bf16.mxu0 0
        %360 = vmatpush1.bf16.msra.mxu0 0
        %361 = vmatprep.mubr.bf16.mxu0 0
        %362 = vmatmul.mubr.bf16.gmra.mrb[0].mxu0 %v318
        %v363 = vpop.f32.mrb[0].mxu0
        %v364 = vadd.f32 0.0, %v363
        %v365 = vpop.f32.mrb[0].mxu0
        %v366 = vadd.f32 0.0, %v365
        %v367 = vpop.f32.mrb[0].mxu0
        %v368 = vadd.f32 0.0, %v367
        %v369 = vpop.f32.mrb[0].mxu0
        %v370 = vadd.f32 0.0, %v369
        %371 = vmatprep.mubr.bf16.mxu0 0
        %372 = vmatmul.mubr.bf16.gmra.mrb[0].mxu0 %v321
        %v373 = vpop.f32.mrb[0].mxu0
        %v374 = vadd.f32 0.0, %v373
        %v375 = vpop.f32.mrb[0].mxu0
        %v376 = vadd.f32 0.0, %v375
        %v377 = vpop.f32.mrb[0].mxu0
        %v378 = vadd.f32 0.0, %v377
        %v379 = vpop.f32.mrb[0].mxu0
        %v380 = vadd.f32 0.0, %v379
        %381 = vmatprep.mubr.bf16.mxu0 0
        %382 = vmatmul.mubr.bf16.gmra.mrb[0].mxu0 %v324
        %v383 = vpop.f32.mrb[0].mxu0
        %v384 = vadd.f32 0.0, %v383
        %v385 = vpop.f32.mrb[0].mxu0
        %v386 = vadd.f32 0.0, %v385
        %v387 = vpop.f32.mrb[0].mxu0
        %v388 = vadd.f32 0.0, %v387
        %v389 = vpop.f32.mrb[0].mxu0
        %v390 = vadd.f32 0.0, %v389
        %391 = vmatprep.mubr.bf16.mxu0 0
        %392 = vmatmul.mubr.bf16.gmra.mrb[0].mxu0 %v327
        %v393 = vpop.f32.mrb[0].mxu0
        %v394 = vadd.f32 0.0, %v393
        %v395 = vpop.f32.mrb[0].mxu0
        %v396 = vadd.f32 0.0, %v395
        %v397 = vpop.f32.mrb[0].mxu0
        %v398 = vadd.f32 0.0, %v397
        %v399 = vpop.f32.mrb[0].mxu0
        %v400 = vadd.f32 0.0, %v399
        %401 = vdwg.mxu0
        %v402 = vld [vmem:[#allocation7] sm:$0xff]
        %v403 = vld [vmem:[#allocation7 + $0x8] sm:$0xff]
        %s404 = scalar_lea.vmem [#allocation7], 16
        %v405 = vld [vmem:[%s404] sm:$0xff]
        %v406 = vld [vmem:[%s404 + $0x8] sm:$0xff]
        %s407 = scalar_lea.vmem [#allocation7], 32
        %v408 = vld [vmem:[%s407] sm:$0xff]
        %v409 = vld [vmem:[%s407 + $0x8] sm:$0xff]
        %s410 = scalar_lea.vmem [#allocation7], 48
        %v411 = vld [vmem:[%s410] sm:$0xff]
        %v412 = vld [vmem:[%s410 + $0x8] sm:$0xff]
        %v413 = vmul.f32 %v364, %v402
        %v414 = vmul.f32 %v368, %v403
        %v415 = vmul.f32 %v374, %v402
        %v416 = vmul.f32 %v378, %v403
        %v417 = vmul.f32 %v384, %v402
        %v418 = vmul.f32 %v388, %v403
        %v419 = vmul.f32 %v394, %v402
        %v420 = vmul.f32 %v398, %v403
        %423 = vrot.lane.b32.xlu0 %v405, 32
        %v424 = vpop.permute.xlu0 %423
        %425 = vrot.lane.b32.xlu0 %v406, 32
        %v426 = vpop.permute.xlu0 %425
        %v429 = vmul.f32 %v364, %v424
        %v430 = vmul.f32 %v368, %v426
        %v431 = vmul.f32 %v374, %v424
        %v432 = vmul.f32 %v378, %v426
        %v433 = vmul.f32 %v384, %v424
        %v434 = vmul.f32 %v388, %v426
        %v435 = vmul.f32 %v394, %v424
        %v436 = vmul.f32 %v398, %v426
        %445 = vrot.lane.b32.xlu0 %v429, 96
        %v446 = vpop.permute.xlu0 %445
        %447 = vrot.lane.b32.xlu0 %v430, 96
        %v448 = vpop.permute.xlu0 %447
        %449 = vrot.lane.b32.xlu0 %v431, 96
        %v450 = vpop.permute.xlu0 %449
        %451 = vrot.lane.b32.xlu0 %v432, 96
        %v452 = vpop.permute.xlu0 %451
        %453 = vrot.lane.b32.xlu0 %v433, 96
        %v454 = vpop.permute.xlu0 %453
        %455 = vrot.lane.b32.xlu0 %v434, 96
        %v456 = vpop.permute.xlu0 %455
        %457 = vrot.lane.b32.xlu0 %v435, 96
        %v458 = vpop.permute.xlu0 %457
        %459 = vrot.lane.b32.xlu0 %v436, 96
        %v460 = vpop.permute.xlu0 %459
        %v469 = vadd.f32 %v413, %v446
        %v470 = vadd.f32 %v414, %v448
        %v471 = vadd.f32 %v415, %v450
        %v472 = vadd.f32 %v416, %v452
        %v473 = vadd.f32 %v417, %v454
        %v474 = vadd.f32 %v418, %v456
        %v475 = vadd.f32 %v419, %v458
        %v476 = vadd.f32 %v420, %v460
        %479 = vrot.lane.b32.xlu0 %v408, 64
        %v480 = vpop.permute.xlu0 %479
        %481 = vrot.lane.b32.xlu0 %v409, 64
        %v482 = vpop.permute.xlu0 %481
        %v485 = vmul.f32 %v364, %v480
        %v486 = vmul.f32 %v368, %v482
        %v487 = vmul.f32 %v374, %v480
        %v488 = vmul.f32 %v378, %v482
        %v489 = vmul.f32 %v384, %v480
        %v490 = vmul.f32 %v388, %v482
        %v491 = vmul.f32 %v394, %v480
        %v492 = vmul.f32 %v398, %v482
        %495 = vrot.lane.b32.xlu0 %v411, 96
        %v496 = vpop.permute.xlu0 %495
        %497 = vrot.lane.b32.xlu0 %v412, 96
        %v498 = vpop.permute.xlu0 %497
        %v501 = vmul.f32 %v364, %v496
        %v502 = vmul.f32 %v368, %v498
        %v503 = vmul.f32 %v374, %v496
        %v504 = vmul.f32 %v378, %v498
        %v505 = vmul.f32 %v384, %v496
        %v506 = vmul.f32 %v388, %v498
        %v507 = vmul.f32 %v394, %v496
        %v508 = vmul.f32 %v398, %v498
        %517 = vrot.lane.b32.xlu0 %v501, 96
        %v518 = vpop.permute.xlu0 %517
        %519 = vrot.lane.b32.xlu0 %v502, 96
        %v520 = vpop.permute.xlu0 %519
        %521 = vrot.lane.b32.xlu0 %v503, 96
        %v522 = vpop.permute.xlu0 %521
        %523 = vrot.lane.b32.xlu0 %v504, 96
        %v524 = vpop.permute.xlu0 %523
        %525 = vrot.lane.b32.xlu0 %v505, 96
        %v526 = vpop.permute.xlu0 %525
        %527 = vrot.lane.b32.xlu0 %v506, 96
        %v528 = vpop.permute.xlu0 %527
        %529 = vrot.lane.b32.xlu0 %v507, 96
        %v530 = vpop.permute.xlu0 %529
        %531 = vrot.lane.b32.xlu0 %v508, 96
        %v532 = vpop.permute.xlu0 %531
        %v541 = vadd.f32 %v485, %v518
        %v542 = vadd.f32 %v486, %v520
        %v543 = vadd.f32 %v487, %v522
        %v544 = vadd.f32 %v488, %v524
        %v545 = vadd.f32 %v489, %v526
        %v546 = vadd.f32 %v490, %v528
        %v547 = vadd.f32 %v491, %v530
        %v548 = vadd.f32 %v492, %v532
        %v549 = vpack.c.bf16 %v470, %v469
        %v550 = vpack.c.bf16 %v472, %v471
        %v551 = vpack.c.bf16 %v474, %v473
        %v552 = vpack.c.bf16 %v476, %v475
        %v553 = vpack.c.bf16 %v542, %v541
        %v554 = vpack.c.bf16 %v544, %v543
        %v555 = vpack.c.bf16 %v546, %v545
        %v556 = vpack.c.bf16 %v548, %v547
        %558 = vrot.lane.b32.xlu0 %v553, 64
        %v559 = vpop.permute.xlu0 %558
        %v561 = vsel %vm316, %v549, 0
        %v564 = vsel %vm316, %v559, 0
        %566 = vmatprep.subr.bf16.mxu0 0
        %567 = vmatpush1.bf16.xpose.msra.mxu0 %v564
        %568 = vmatprep.subr.bf16.mxu0 0
        %569 = vmatpush1.bf16.xpose.msra.mxu0 0
        %570 = vmatprep.subr.bf16.mxu0 0
        %571 = vmatpush1.bf16.xpose.msra.mxu0 0
        %572 = vmatprep.subr.bf16.mxu0 0
        %573 = vmatpush1.bf16.xpose.msra.mxu0 0
        %574 = vmatprep.subr.bf16.mxu0 0
        %575 = vmatpush1.bf16.xpose.msra.mxu0 0
        %576 = vmatprep.subr.bf16.mxu0 0
        %577 = vmatpush1.bf16.xpose.msra.mxu0 0
        %578 = vmatprep.subr.bf16.mxu0 0
        %579 = vmatpush1.bf16.xpose.msra.mxu0 0
        %580 = vmatprep.subr.bf16.mxu0 0
        %581 = vmatpush1.bf16.xpose.msra.mxu0 0
        %582 = vmatprep.subr.bf16.mxu0 0
        %583 = vmatpush1.bf16.xpose.msra.mxu0 0
        %584 = vmatprep.subr.bf16.mxu0 0
        %585 = vmatpush1.bf16.xpose.msra.mxu0 0
        %586 = vmatprep.subr.bf16.mxu0 0
        %587 = vmatpush1.bf16.xpose.msra.mxu0 0
        %588 = vmatprep.subr.bf16.mxu0 0
        %589 = vmatpush1.bf16.xpose.msra.mxu0 0
        %590 = vmatprep.subr.bf16.mxu0 0
        %591 = vmatpush1.bf16.xpose.msra.mxu0 0
        %592 = vmatprep.subr.bf16.mxu0 0
        %593 = vmatpush1.bf16.xpose.msra.mxu0 0
        %594 = vmatprep.subr.bf16.mxu0 0
        %595 = vmatpush1.bf16.xpose.msra.mxu0 0
        %596 = vmatprep.subr.bf16.mxu0 0
        %597 = vmatpush1.bf16.xpose.msra.mxu0 0
        %598 = vmatprep.mubr.bf16.mxu0 0
        %599 = vmatmul.mubr.bf16.gmra.mrb[0].mxu0 %v561
        %v600 = vpop.f32.mrb[0].mxu0
        %v601 = vadd.f32 0.0, %v600
        %v602 = vpop.f32.mrb[0].mxu0
        %v603 = vpop.f32.mrb[0].mxu0
        %v604 = vadd.f32 0.0, %v603
        %v605 = vpop.f32.mrb[0].mxu0
        %606 = vdwg.mxu0
        %608 = vrot.lane.b32.xlu0 %v554, 64
        %v609 = vpop.permute.xlu0 %608
        %v611 = vsel %vm316, %v550, 0
        %v614 = vsel %vm316, %v609, 0
        %616 = vmatprep.subr.bf16.mxu0 0
        %617 = vmatpush1.bf16.xpose.msra.mxu0 %v614
        %618 = vmatprep.subr.bf16.mxu0 0
        %619 = vmatpush1.bf16.xpose.msra.mxu0 0
        %620 = vmatprep.subr.bf16.mxu0 0
        %621 = vmatpush1.bf16.xpose.msra.mxu0 0
        %622 = vmatprep.subr.bf16.mxu0 0
        %623 = vmatpush1.bf16.xpose.msra.mxu0 0
        %624 = vmatprep.subr.bf16.mxu0 0
        %625 = vmatpush1.bf16.xpose.msra.mxu0 0
        %626 = vmatprep.subr.bf16.mxu0 0
        %627 = vmatpush1.bf16.xpose.msra.mxu0 0
        %628 = vmatprep.subr.bf16.mxu0 0
        %629 = vmatpush1.bf16.xpose.msra.mxu0 0
        %630 = vmatprep.subr.bf16.mxu0 0
        %631 = vmatpush1.bf16.xpose.msra.mxu0 0
        %632 = vmatprep.subr.bf16.mxu0 0
        %633 = vmatpush1.bf16.xpose.msra.mxu0 0
        %634 = vmatprep.subr.bf16.mxu0 0
        %635 = vmatpush1.bf16.xpose.msra.mxu0 0
        %636 = vmatprep.subr.bf16.mxu0 0
        %637 = vmatpush1.bf16.xpose.msra.mxu0 0
        %638 = vmatprep.subr.bf16.mxu0 0
        %639 = vmatpush1.bf16.xpose.msra.mxu0 0
        %640 = vmatprep.subr.bf16.mxu0 0
        %641 = vmatpush1.bf16.xpose.msra.mxu0 0
        %642 = vmatprep.subr.bf16.mxu0 0
        %643 = vmatpush1.bf16.xpose.msra.mxu0 0
        %644 = vmatprep.subr.bf16.mxu0 0
        %645 = vmatpush1.bf16.xpose.msra.mxu0 0
        %646 = vmatprep.subr.bf16.mxu0 0
        %647 = vmatpush1.bf16.xpose.msra.mxu0 0
        %648 = vmatprep.mubr.bf16.mxu0 0
        %649 = vmatmul.mubr.bf16.gmra.mrb[0].mxu0 %v611
        %v650 = vpop.f32.mrb[0].mxu0
        %v651 = vadd.f32 0.0, %v650
        %v652 = vpop.f32.mrb[0].mxu0
        %v653 = vpop.f32.mrb[0].mxu0
        %v654 = vadd.f32 0.0, %v653
        %v655 = vpop.f32.mrb[0].mxu0
        %656 = vdwg.mxu0
        %658 = vrot.lane.b32.xlu0 %v555, 64
        %v659 = vpop.permute.xlu0 %658
        %v661 = vsel %vm316, %v551, 0
        %v664 = vsel %vm316, %v659, 0
        %666 = vmatprep.subr.bf16.mxu0 0
        %667 = vmatpush1.bf16.xpose.msra.mxu0 %v664
        %668 = vmatprep.subr.bf16.mxu0 0
        %669 = vmatpush1.bf16.xpose.msra.mxu0 0
        %670 = vmatprep.subr.bf16.mxu0 0
        %671 = vmatpush1.bf16.xpose.msra.mxu0 0
        %672 = vmatprep.subr.bf16.mxu0 0
        %673 = vmatpush1.bf16.xpose.msra.mxu0 0
        %674 = vmatprep.subr.bf16.mxu0 0
        %675 = vmatpush1.bf16.xpose.msra.mxu0 0
        %676 = vmatprep.subr.bf16.mxu0 0
        %677 = vmatpush1.bf16.xpose.msra.mxu0 0
        %678 = vmatprep.subr.bf16.mxu0 0
        %679 = vmatpush1.bf16.xpose.msra.mxu0 0
        %680 = vmatprep.subr.bf16.mxu0 0
        %681 = vmatpush1.bf16.xpose.msra.mxu0 0
        %682 = vmatprep.subr.bf16.mxu0 0
        %683 = vmatpush1.bf16.xpose.msra.mxu0 0
        %684 = vmatprep.subr.bf16.mxu0 0
        %685 = vmatpush1.bf16.xpose.msra.mxu0 0
        %686 = vmatprep.subr.bf16.mxu0 0
        %687 = vmatpush1.bf16.xpose.msra.mxu0 0
        %688 = vmatprep.subr.bf16.mxu0 0
        %689 = vmatpush1.bf16.xpose.msra.mxu0 0
        %690 = vmatprep.subr.bf16.mxu0 0
        %691 = vmatpush1.bf16.xpose.msra.mxu0 0
        %692 = vmatprep.subr.bf16.mxu0 0
        %693 = vmatpush1.bf16.xpose.msra.mxu0 0
        %694 = vmatprep.subr.bf16.mxu0 0
        %695 = vmatpush1.bf16.xpose.msra.mxu0 0
        %696 = vmatprep.subr.bf16.mxu0 0
        %697 = vmatpush1.bf16.xpose.msra.mxu0 0
        %698 = vmatprep.mubr.bf16.mxu0 0
        %699 = vmatmul.mubr.bf16.gmra.mrb[0].mxu0 %v661
        %v700 = vpop.f32.mrb[0].mxu0
        %v701 = vadd.f32 0.0, %v700
        %v702 = vpop.f32.mrb[0].mxu0
        %v703 = vpop.f32.mrb[0].mxu0
        %v704 = vadd.f32 0.0, %v703
        %v705 = vpop.f32.mrb[0].mxu0
        %706 = vdwg.mxu0
        %708 = vrot.lane.b32.xlu0 %v556, 64
        %v709 = vpop.permute.xlu0 %708
        %v711 = vsel %vm316, %v552, 0
        %v714 = vsel %vm316, %v709, 0
        %716 = vmatprep.subr.bf16.mxu0 0
        %717 = vmatpush1.bf16.xpose.msra.mxu0 %v714
        %718 = vmatprep.subr.bf16.mxu0 0
        %719 = vmatpush1.bf16.xpose.msra.mxu0 0
        %720 = vmatprep.subr.bf16.mxu0 0
        %721 = vmatpush1.bf16.xpose.msra.mxu0 0
        %722 = vmatprep.subr.bf16.mxu0 0
        %723 = vmatpush1.bf16.xpose.msra.mxu0 0
        %724 = vmatprep.subr.bf16.mxu0 0
        %725 = vmatpush1.bf16.xpose.msra.mxu0 0
        %726 = vmatprep.subr.bf16.mxu0 0
        %727 = vmatpush1.bf16.xpose.msra.mxu0 0
        %728 = vmatprep.subr.bf16.mxu0 0
        %729 = vmatpush1.bf16.xpose.msra.mxu0 0
        %730 = vmatprep.subr.bf16.mxu0 0
        %731 = vmatpush1.bf16.xpose.msra.mxu0 0
        %732 = vmatprep.subr.bf16.mxu0 0
        %733 = vmatpush1.bf16.xpose.msra.mxu0 0
        %734 = vmatprep.subr.bf16.mxu0 0
        %735 = vmatpush1.bf16.xpose.msra.mxu0 0
        %736 = vmatprep.subr.bf16.mxu0 0
        %737 = vmatpush1.bf16.xpose.msra.mxu0 0
        %738 = vmatprep.subr.bf16.mxu0 0
        %739 = vmatpush1.bf16.xpose.msra.mxu0 0
        %740 = vmatprep.subr.bf16.mxu0 0
        %741 = vmatpush1.bf16.xpose.msra.mxu0 0
        %742 = vmatprep.subr.bf16.mxu0 0
        %743 = vmatpush1.bf16.xpose.msra.mxu0 0
        %744 = vmatprep.subr.bf16.mxu0 0
        %745 = vmatpush1.bf16.xpose.msra.mxu0 0
        %746 = vmatprep.subr.bf16.mxu0 0
        %747 = vmatpush1.bf16.xpose.msra.mxu0 0
        %748 = vmatprep.mubr.bf16.mxu0 0
        %749 = vmatmul.mubr.bf16.gmra.mrb[0].mxu0 %v711
        %v750 = vpop.f32.mrb[0].mxu0
        %v751 = vadd.f32 0.0, %v750
        %v752 = vpop.f32.mrb[0].mxu0
        %v753 = vpop.f32.mrb[0].mxu0
        %v754 = vadd.f32 0.0, %v753
        %v755 = vpop.f32.mrb[0].mxu0
        %756 = vdwg.mxu0
        %v757 = vld [vmem:[#allocation8] sm:$0xff]
        %v758 = vld [vmem:[#allocation8 + $0x8] sm:$0xff]
        %v759 = vld [vmem:[#allocation8 + $0x10] sm:$0xff]
        %v760 = vld [vmem:[#allocation8 + $0x18] sm:$0xff]
        %v761 = vld [vmem:[#allocation8 + $0x20] sm:$0xff]
        %v762 = vld [vmem:[#allocation8 + $0x28] sm:$0xff]
        %v763 = vld [vmem:[#allocation8 + $0x30] sm:$0xff]
        %v764 = vld [vmem:[#allocation8 + $0x38] sm:$0xff]
        %v765 = vmul.f32 %v601, %v757
        %v766 = vmul.f32 %v604, %v758
        %v767 = vmul.f32 %v651, %v759
        %v768 = vmul.f32 %v654, %v760
        %v769 = vmul.f32 %v701, %v761
        %v770 = vmul.f32 %v704, %v762
        %v771 = vmul.f32 %v751, %v763
        %v772 = vmul.f32 %v754, %v764
        %v773 = vpack.c.bf16 %v766, %v765
        %v774 = vpack.c.bf16 %v768, %v767
        %v775 = vpack.c.bf16 %v770, %v769
        %v776 = vpack.c.bf16 %v772, %v771
        %v777 = vpack.c.bf16 %v370, %v366
        %v778 = vpack.c.bf16 %v380, %v376
        %v779 = vpack.c.bf16 %v390, %v386
        %v780 = vpack.c.bf16 %v400, %v396
        %vm781 = vcmask 130048
        %v783 = vsel %vm781, %v773, 0
        %785 = vmatprep.subr.bf16.mxu0 0
        %786 = vmatpush1.bf16.msra.mxu0 %v777
        %787 = vmatprep.subr.bf16.mxu0 0
        %788 = vmatpush1.bf16.msra.mxu0 0
        %789 = vmatprep.subr.bf16.mxu0 0
        %790 = vmatpush1.bf16.msra.mxu0 0
        %791 = vmatprep.subr.bf16.mxu0 0
        %792 = vmatpush1.bf16.msra.mxu0 0
        %793 = vmatprep.subr.bf16.mxu0 0
        %794 = vmatpush1.bf16.msra.mxu0 0
        %795 = vmatprep.subr.bf16.mxu0 0
        %796 = vmatpush1.bf16.msra.mxu0 0
        %797 = vmatprep.subr.bf16.mxu0 0
        %798 = vmatpush1.bf16.msra.mxu0 0
        %799 = vmatprep.subr.bf16.mxu0 0
        %800 = vmatpush1.bf16.msra.mxu0 0
        %801 = vmatprep.subr.bf16.mxu0 0
        %802 = vmatpush1.bf16.msra.mxu0 0
        %803 = vmatprep.subr.bf16.mxu0 0
        %804 = vmatpush1.bf16.msra.mxu0 0
        %805 = vmatprep.subr.bf16.mxu0 0
        %806 = vmatpush1.bf16.msra.mxu0 0
        %807 = vmatprep.subr.bf16.mxu0 0
        %808 = vmatpush1.bf16.msra.mxu0 0
        %809 = vmatprep.subr.bf16.mxu0 0
        %810 = vmatpush1.bf16.msra.mxu0 0
        %811 = vmatprep.subr.bf16.mxu0 0
        %812 = vmatpush1.bf16.msra.mxu0 0
        %813 = vmatprep.subr.bf16.mxu0 0
        %814 = vmatpush1.bf16.msra.mxu0 0
        %815 = vmatprep.subr.bf16.mxu0 0
        %816 = vmatpush1.bf16.msra.mxu0 0
        %817 = vmatprep.mubr.bf16.mxu0 0
        %818 = vmatmul.mubr.bf16.gmra.mrb[0].mxu0 %v783
        %v819 = vpop.f32.mrb[0].mxu0
        %v820 = vadd.f32 0.0, %v819
        %v821 = vpop.f32.mrb[0].mxu0
        %v822 = vpop.f32.mrb[0].mxu0
        %v823 = vadd.f32 0.0, %v822
        %v824 = vpop.f32.mrb[0].mxu0
        %825 = vdwg.mxu0
        %v827 = vsel %vm781, %v774, 0
        %829 = vmatprep.subr.bf16.mxu0 0
        %830 = vmatpush1.bf16.msra.mxu0 %v778
        %831 = vmatprep.subr.bf16.mxu0 0
        %832 = vmatpush1.bf16.msra.mxu0 0
        %833 = vmatprep.subr.bf16.mxu0 0
        %834 = vmatpush1.bf16.msra.mxu0 0
        %835 = vmatprep.subr.bf16.mxu0 0
        %836 = vmatpush1.bf16.msra.mxu0 0
        %837 = vmatprep.subr.bf16.mxu0 0
        %838 = vmatpush1.bf16.msra.mxu0 0
        %839 = vmatprep.subr.bf16.mxu0 0
        %840 = vmatpush1.bf16.msra.mxu0 0
        %841 = vmatprep.subr.bf16.mxu0 0
        %842 = vmatpush1.bf16.msra.mxu0 0
        %843 = vmatprep.subr.bf16.mxu0 0
        %844 = vmatpush1.bf16.msra.mxu0 0
        %845 = vmatprep.subr.bf16.mxu0 0
        %846 = vmatpush1.bf16.msra.mxu0 0
        %847 = vmatprep.subr.bf16.mxu0 0
        %848 = vmatpush1.bf16.msra.mxu0 0
        %849 = vmatprep.subr.bf16.mxu0 0
        %850 = vmatpush1.bf16.msra.mxu0 0
        %851 = vmatprep.subr.bf16.mxu0 0
        %852 = vmatpush1.bf16.msra.mxu0 0
        %853 = vmatprep.subr.bf16.mxu0 0
        %854 = vmatpush1.bf16.msra.mxu0 0
        %855 = vmatprep.subr.bf16.mxu0 0
        %856 = vmatpush1.bf16.msra.mxu0 0
        %857 = vmatprep.subr.bf16.mxu0 0
        %858 = vmatpush1.bf16.msra.mxu0 0
        %859 = vmatprep.subr.bf16.mxu0 0
        %860 = vmatpush1.bf16.msra.mxu0 0
        %861 = vmatprep.mubr.bf16.mxu0 0
        %862 = vmatmul.mubr.bf16.gmra.mrb[0].mxu0 %v827
        %v863 = vpop.f32.mrb[0].mxu0
        %v864 = vadd.f32 0.0, %v863
        %v865 = vpop.f32.mrb[0].mxu0
        %v866 = vpop.f32.mrb[0].mxu0
        %v867 = vadd.f32 0.0, %v866
        %v868 = vpop.f32.mrb[0].mxu0
        %869 = vdwg.mxu0
        %v871 = vsel %vm781, %v775, 0
        %873 = vmatprep.subr.bf16.mxu0 0
        %874 = vmatpush1.bf16.msra.mxu0 %v779
        %875 = vmatprep.subr.bf16.mxu0 0
        %876 = vmatpush1.bf16.msra.mxu0 0
        %877 = vmatprep.subr.bf16.mxu0 0
        %878 = vmatpush1.bf16.msra.mxu0 0
        %879 = vmatprep.subr.bf16.mxu0 0
        %880 = vmatpush1.bf16.msra.mxu0 0
        %881 = vmatprep.subr.bf16.mxu0 0
        %882 = vmatpush1.bf16.msra.mxu0 0
        %883 = vmatprep.subr.bf16.mxu0 0
        %884 = vmatpush1.bf16.msra.mxu0 0
        %885 = vmatprep.subr.bf16.mxu0 0
        %886 = vmatpush1.bf16.msra.mxu0 0
        %887 = vmatprep.subr.bf16.mxu0 0
        %888 = vmatpush1.bf16.msra.mxu0 0
        %889 = vmatprep.subr.bf16.mxu0 0
        %890 = vmatpush1.bf16.msra.mxu0 0
        %891 = vmatprep.subr.bf16.mxu0 0
        %892 = vmatpush1.bf16.msra.mxu0 0
        %893 = vmatprep.subr.bf16.mxu0 0
        %894 = vmatpush1.bf16.msra.mxu0 0
        %895 = vmatprep.subr.bf16.mxu0 0
        %896 = vmatpush1.bf16.msra.mxu0 0
        %897 = vmatprep.subr.bf16.mxu0 0
        %898 = vmatpush1.bf16.msra.mxu0 0
        %899 = vmatprep.subr.bf16.mxu0 0
        %900 = vmatpush1.bf16.msra.mxu0 0
        %901 = vmatprep.subr.bf16.mxu0 0
        %902 = vmatpush1.bf16.msra.mxu0 0
        %903 = vmatprep.subr.bf16.mxu0 0
        %904 = vmatpush1.bf16.msra.mxu0 0
        %905 = vmatprep.mubr.bf16.mxu0 0
        %906 = vmatmul.mubr.bf16.gmra.mrb[0].mxu0 %v871
        %v907 = vpop.f32.mrb[0].mxu0
        %v908 = vadd.f32 0.0, %v907
        %v909 = vpop.f32.mrb[0].mxu0
        %v910 = vpop.f32.mrb[0].mxu0
        %v911 = vadd.f32 0.0, %v910
        %v912 = vpop.f32.mrb[0].mxu0
        %913 = vdwg.mxu0
        %v915 = vsel %vm781, %v776, 0
        %917 = vmatprep.subr.bf16.mxu0 0
        %918 = vmatpush1.bf16.msra.mxu0 %v780
        %919 = vmatprep.subr.bf16.mxu0 0
        %920 = vmatpush1.bf16.msra.mxu0 0
        %921 = vmatprep.subr.bf16.mxu0 0
        %922 = vmatpush1.bf16.msra.mxu0 0
        %923 = vmatprep.subr.bf16.mxu0 0
        %924 = vmatpush1.bf16.msra.mxu0 0
        %925 = vmatprep.subr.bf16.mxu0 0
        %926 = vmatpush1.bf16.msra.mxu0 0
        %927 = vmatprep.subr.bf16.mxu0 0
        %928 = vmatpush1.bf16.msra.mxu0 0
        %929 = vmatprep.subr.bf16.mxu0 0
        %930 = vmatpush1.bf16.msra.mxu0 0
        %931 = vmatprep.subr.bf16.mxu0 0
        %932 = vmatpush1.bf16.msra.mxu0 0
        %933 = vmatprep.subr.bf16.mxu0 0
        %934 = vmatpush1.bf16.msra.mxu0 0
        %935 = vmatprep.subr.bf16.mxu0 0
        %936 = vmatpush1.bf16.msra.mxu0 0
        %937 = vmatprep.subr.bf16.mxu0 0
        %938 = vmatpush1.bf16.msra.mxu0 0
        %939 = vmatprep.subr.bf16.mxu0 0
        %940 = vmatpush1.bf16.msra.mxu0 0
        %941 = vmatprep.subr.bf16.mxu0 0
        %942 = vmatpush1.bf16.msra.mxu0 0
        %943 = vmatprep.subr.bf16.mxu0 0
        %944 = vmatpush1.bf16.msra.mxu0 0
        %945 = vmatprep.subr.bf16.mxu0 0
        %946 = vmatpush1.bf16.msra.mxu0 0
        %947 = vmatprep.subr.bf16.mxu0 0
        %948 = vmatpush1.bf16.msra.mxu0 0
        %949 = vmatprep.mubr.bf16.mxu0 0
        %950 = vmatmul.mubr.bf16.gmra.mrb[0].mxu0 %v915
        %v951 = vpop.f32.mrb[0].mxu0
        %v952 = vadd.f32 0.0, %v951
        %v953 = vpop.f32.mrb[0].mxu0
        %v954 = vpop.f32.mrb[0].mxu0
        %v955 = vadd.f32 0.0, %v954
        %v956 = vpop.f32.mrb[0].mxu0
        %957 = vdwg.mxu0
        %958 = vst.msk [vmem:[%s260] sm:$0xff] %vm316, %v820
        %959 = vst.msk [vmem:[%s260 + $0x8] sm:$0xff] %vm316, %v823
        %960 = vst.msk [vmem:[%s260 + $0x10] sm:$0xff] %vm316, %v864
        %961 = vst.msk [vmem:[%s260 + $0x18] sm:$0xff] %vm316, %v867
        %962 = vst.msk [vmem:[%s260 + $0x20] sm:$0xff] %vm316, %v908
        %963 = vst.msk [vmem:[%s260 + $0x28] sm:$0xff] %vm316, %v911
        %964 = vst.msk [vmem:[%s260 + $0x30] sm:$0xff] %vm316, %v952
        %965 = vst.msk [vmem:[%s260 + $0x38] sm:$0xff] %vm316, %v955
        %s966 = sand.u32 %s120, 1
        %s967 = scalar_lea.sflag [#allocation4], %s966
        %s968 = sand.u32 %s120, 1
        %s969 = smul.addr %s968, 64
        %s970 = scalar_lea.vmem [#allocation10], %s969
        // Predicated region
        $region53: #{tpu_custom_call.1} parent=35 // pred_check
          %p971 = pneg %p130
        $region54: #{tpu_custom_call.1} parent=35 // pred_check_branch
          %973 = sbr.rel (%p971) target = $region56
        $region55: #{tpu_custom_call.1} parent=35 // pred_region
          %s974 = smul.u32 4, %s23
          %s976 = ssub.s32 1024, 1024
          %977 = vsyncadd %s967, %s976
          %s978 = smul.addr %s974, 2
          %s979 = smul.addr %s978, 128
          %s980 = scalar_lea.hbm %s4, %s979
          %s981 = sshll.u32 %s970, 4
          %s982 = int_to_ptr.vmem [resolvable:$true] %s981
          %987 = dma.vmem_to_hbm [thread:$0]  %s982, 1024, %s980, %s967, 128, 128, 8
        $region56: #{tpu_custom_call.1} parent=35 // pred_fallthru
          _
      $region36: #{tpu_custom_call.1} parent=5 // pred_fallthru
        _
      %p988 = scmp.le.s32.totalorder 2, %s18
      // Predicated region
      $region57: #{tpu_custom_call.1} parent=5 // pred_check
        %p989 = pneg %p988
      $region58: #{tpu_custom_call.1} parent=5 // pred_check_branch
        %991 = sbr.rel (%p989) target = $region60
      $region59: #{tpu_custom_call.1} parent=5 // pred_region
        %s992 = ssub.s32 %s18, 2
        // Predicated region
        $region61: #{tpu_custom_call.1} parent=59 // pred_check
          %p993 = pneg %p136
        $region62: #{tpu_custom_call.1} parent=59 // pred_check_branch
          %995 = sbr.rel (%p993) target = $region64
        $region63: #{tpu_custom_call.1} parent=59 // pred_region
          %s996 = sand.u32 %s121, 1
          %s997 = scalar_lea.sflag [#allocation4], %s996
          %s998 = sand.u32 %s121, 1
          %s999 = smul.addr %s998, 64
          %s1000 = scalar_lea.vmem [#allocation10], %s999
          %1001 = dma.done %s997, 1024
        $region64: #{tpu_custom_call.1} parent=59 // pred_fallthru
          _
      $region60: #{tpu_custom_call.1} parent=5 // pred_fallthru
        _
    $region6: #{tpu_custom_call.1} parent=1 // loop_footer
      %s22 = sadd.s32 1, %s18
    $region7: #{tpu_custom_call.1} parent=1 // loop_footer_branch
      %17 = sbr.rel target = $region3
    $region8: #{tpu_custom_call.1} parent=1 // loop_exit
      _
    %1002 = vsyncpa [#allocation3], 1
    %s1003 = scalar_lea.sflag [#allocation3], 1
    %1004 = vsyncpa %s1003, 1
    %1005 = vsyncpa [#allocation6], 1
    %1006 = vsyncpa [#allocation9], 1
    %1007 = vsyncpa [#allocation4], 1
    %s1008 = scalar_lea.sflag [#allocation4], 1
    %1009 = vsyncpa %s1008, 1

</llo_original>
